<compile_context>
chip_gen: v7x
topology: tpu7x:2x2x1
jax: 0.10.0
libtpu: 0.0.40
codegen_flags: <defaults>
</compile_context>

<pallas_src>
import functools

import jax
import jax.numpy as jnp
from jax.experimental import pallas as pl
from jax.experimental.pallas import tpu as pltpu

LANES = 128              # lane width: N and the class dim pad to multiples
NEG_PAD_BIAS = -1e9      # padded-class bias -> exp() == 0 under log_softmax
_FALLBACK_VMEM_CAP = 64 * 1024 * 1024


# ---------------------------------------------------------------------------
# Small helpers
# ---------------------------------------------------------------------------

def _round_up(x, m):
    return ((x + m - 1) // m) * m


def _vmem_limit_bytes():
    """Scoped-VMEM limit with ~20% headroom for pipeline buffers / scratch."""
    try:
        cap = int(pltpu.get_tpu_info().vmem_capacity_bytes)
    except Exception:
        cap = _FALLBACK_VMEM_CAP          # conservative: safe on every gen
    return max(32 * 1024 * 1024, int(cap * 0.8))


def _pick_row_tile(n_pad):
    """Prefer >=4 row tiles (v7x megacore balance + per-core pipelining),
    tiles of 256-512 rows where possible, never below 128."""
    for cand in (512, 256, 128):
        if n_pad % cand == 0 and n_pad // cand >= 4:
            return cand
    for cand in (512, 256, 128):
        if n_pad % cand == 0:
            return cand
    return 128


def _pick_k_tile(n_pad):
    """~512-wide contraction slabs keep the Ahat DMA near the HBM roofline."""
    for cand in (512, 256, 128):
        if n_pad % cand == 0:
            return cand
    return 128


def _fused_vmem_estimate(n_pad, f_in, hid, c_pad):
    """Rough resident-VMEM bytes for the single-shot fused kernel."""
    a_bytes = n_pad * n_pad * 2                        # Ahat (bf16)
    x_bytes = n_pad * f_in * 2                         # features (bf16)
    w_bytes = (f_in * hid + hid * hid + hid * c_pad) * 2
    b_bytes = (hid + hid + c_pad) * 4
    out_bytes = n_pad * c_pad * 4                      # padded logits (f32)
    tmp_bytes = 3 * n_pad * max(f_in, hid, c_pad) * 4  # compiler temporaries
    return a_bytes + x_bytes + w_bytes + b_bytes + out_bytes + tmp_bytes


# ---------------------------------------------------------------------------
# Kernels
# ---------------------------------------------------------------------------

def gcn3_fused_kernel(a_ref, x_ref, w1_ref, b1_ref, w2_ref, b2_ref,
                      w3_ref, b3_ref, out_ref):
    """Fused 3-layer GCN; aggregate-first per layer, bf16 MXU / f32 accum."""
    # layer 1: relu( (Ahat @ X) @ W1 + b1 )   (aggregation width = in_channels)
    h = jnp.dot(a_ref[...], x_ref[...], preferred_element_type=jnp.float32)
    h = jnp.dot(h.astype(jnp.bfloat16), w1_ref[...],
                preferred_element_type=jnp.float32) + b1_ref[...]
    h = jnp.maximum(h, 0.0).astype(jnp.bfloat16)

    # layer 2: relu( (Ahat @ h) @ W2 + b2 )   (aggregation width = hidden)
    h = jnp.dot(a_ref[...], h, preferred_element_type=jnp.float32)
    h = jnp.dot(h.astype(jnp.bfloat16), w2_ref[...],
                preferred_element_type=jnp.float32) + b2_ref[...]
    h = jnp.maximum(h, 0.0).astype(jnp.bfloat16)

    # layer 3: (Ahat @ h) @ W3p + b3p, then log_softmax over the lane-padded
    # class axis (padded classes carry a -1e9 bias -> exp() == 0).
    h = jnp.dot(a_ref[...], h, preferred_element_type=jnp.float32)
    z = jnp.dot(h.astype(jnp.bfloat16), w3_ref[...],
                preferred_element_type=jnp.float32) + b3_ref[...]
    m = jnp.max(z, axis=-1, keepdims=True)
    zz = z - m
    lse = jnp.log(jnp.sum(jnp.exp(zz), axis=-1, keepdims=True))
    out_ref[...] = zz - lse


def graphconv_tiled_kernel(a_ref, h_ref, w_ref, b_ref, out_ref, acc_ref, *,
                           activation):
    """One GraphConv layer, row x K tiled.

       acc[i] += A[i, k] @ H[k]                     (f32 VMEM accumulator)
       on the last k:  act( acc[i] @ W + b ) -> out[i]
    """
    k = pl.program_id(1)

    @pl.when(k == 0)
    def _init():
        acc_ref[...] = jnp.zeros_like(acc_ref)

    acc_ref[...] += jnp.dot(a_ref[...], h_ref[...],
                            preferred_element_type=jnp.float32)

    @pl.when(k == pl.num_programs(1) - 1)
    def _finalize():
        z = jnp.dot(acc_ref[...].astype(jnp.bfloat16), w_ref[...],
                    preferred_element_type=jnp.float32) + b_ref[...]
        if activation == "relu":
            out_ref[...] = jnp.maximum(z, 0.0).astype(out_ref.dtype)
        elif activation == "log_softmax":
            m = jnp.max(z, axis=-1, keepdims=True)
            zz = z - m
            lse = jnp.log(jnp.sum(jnp.exp(zz), axis=-1, keepdims=True))
            out_ref[...] = (zz - lse).astype(out_ref.dtype)
        else:
            out_ref[...] = z.astype(out_ref.dtype)


# ---------------------------------------------------------------------------
# pallas_call wrappers
# ---------------------------------------------------------------------------

def _forward_fused(a_bf16, x_bf16, w1, b1, w2, b2, w3p, b3p, *, vmem_limit):
    n = a_bf16.shape[0]
    f_in, hid = w1.shape
    c_pad = w3p.shape[1]
    flops = int(2 * n * n * (f_in + hid + hid)
                + 2 * n * (f_in * hid + hid * hid + hid * c_pad))
    bytes_acc = int((n * n + n * f_in) * 2
                    + (f_in * hid + hid * hid + hid * c_pad) * 2
                    + (hid + hid + c_pad) * 4
                    + n * c_pad * 4)
    vmem = pl.BlockSpec(memory_space=pltpu.MemorySpace.VMEM)
    return pl.pallas_call(
        gcn3_fused_kernel,
        out_shape=jax.ShapeDtypeStruct((n, c_pad), jnp.float32),
        in_specs=[vmem] * 8,
        out_specs=vmem,
        compiler_params=pltpu.CompilerParams(vmem_limit_bytes=vmem_limit),
        cost_estimate=pl.CostEstimate(
            flops=flops,
            transcendentals=int(n * (c_pad + 1)),
            bytes_accessed=bytes_acc),
    )(a_bf16, x_bf16, w1, b1, w2, b2, w3p, b3p)


def _graphconv_layer(a_bf16, h_bf16, w_bf16, b_f32, *, activation, out_dtype,
                     tile_rows, tile_k, vmem_limit):
    n = a_bf16.shape[0]
    f_in = h_bf16.shape[1]
    f_out = w_bf16.shape[1]
    assert n % tile_rows == 0 and n % tile_k == 0
    out_bytes = jnp.dtype(out_dtype).itemsize
    kernel = functools.partial(graphconv_tiled_kernel, activation=activation)
    return pl.pallas_call(
        kernel,
        out_shape=jax.ShapeDtypeStruct((n, f_out), out_dtype),
        grid=(n // tile_rows, n // tile_k),
        in_specs=[
            pl.BlockSpec((tile_rows, tile_k), lambda i, k: (i, k)),  # Ahat tile
            pl.BlockSpec((tile_k, f_in), lambda i, k: (k, 0)),       # H K-slab
            pl.BlockSpec((f_in, f_out), lambda i, k: (0, 0)),        # weights
            pl.BlockSpec((1, f_out), lambda i, k: (0, 0)),           # bias
        ],
        out_specs=pl.BlockSpec((tile_rows, f_out), lambda i, k: (i, 0)),
        scratch_shapes=[pltpu.VMEM((tile_rows, f_in), jnp.float32)],
        compiler_params=pltpu.CompilerParams(
            dimension_semantics=("parallel", "arbitrary"),
            vmem_limit_bytes=vmem_limit),
        cost_estimate=pl.CostEstimate(
            flops=int(2 * n * n * f_in + 2 * n * f_in * f_out),
            transcendentals=int(n * (f_out + 1)
                                if activation == "log_softmax" else 0),
            bytes_accessed=int((n * n + n * f_in + f_in * f_out) * 2
                               + f_out * 4 + n * f_out * out_bytes)),
    )(a_bf16, h_bf16, w_bf16, b_f32)


# ---------------------------------------------------------------------------
# Forward pass
# ---------------------------------------------------------------------------

def dgl_net_forward(a_norm, features, params, *, force_tiled=False):
    """DGL_Net forward: log_softmax(L3(relu(L2(relu(L1(X)))))) with
    Li(X) = Ahat @ X @ Wi + bi. Fused single kernel when Ahat fits the
    generation-derived VMEM budget, otherwise three row x K tiled kernels."""
    w1, b1, w2, b2, w3, b3 = params
    n = a_norm.shape[0]
    in_ch = features.shape[1]
    hid = w1.shape[1]
    out_ch = w3.shape[1]
    n_pad = _round_up(n, LANES)
    c_pad = _round_up(out_ch, LANES)
    vmem_limit = _vmem_limit_bytes()

    # Pad N to a lane-dense multiple of 128 (zero rows/cols of Ahat and zero
    # feature rows are inert after normalization); sliced off below.
    a_p = jnp.zeros((n_pad, n_pad), jnp.float32).at[:n, :n].set(a_norm)
    x_p = jnp.zeros((n_pad, in_ch), jnp.float32).at[:n, :].set(features)

    # bf16 MXU operands (f32 accumulation inside the kernels), f32 biases.
    a_bf16 = a_p.astype(jnp.bfloat16)
    x_bf16 = x_p.astype(jnp.bfloat16)
    w1b = w1.astype(jnp.bfloat16)
    w2b = w2.astype(jnp.bfloat16)
    b1r = b1.reshape(1, -1).astype(jnp.float32)
    b2r = b2.reshape(1, -1).astype(jnp.float32)
    # Lane-dense (128-padded) class dim; padded classes get a -1e9 bias so
    # they drop out of log_softmax; sliced back to out_ch below.
    w3p = jnp.zeros((hid, c_pad), jnp.bfloat16).at[:, :out_ch].set(
        w3.astype(jnp.bfloat16))
    b3p = jnp.full((1, c_pad), NEG_PAD_BIAS, jnp.float32).at[0, :out_ch].set(
        b3.astype(jnp.float32))

    fused_fits = (_fused_vmem_estimate(n_pad, in_ch, hid, c_pad)
                  <= int(0.7 * vmem_limit))
    if fused_fits and not force_tiled:
        out_pad = _forward_fused(a_bf16, x_bf16, w1b, b1r, w2b, b2r, w3p, b3p,
                                 vmem_limit=vmem_limit)
    else:
        tile_rows = _pick_row_tile(n_pad)
        tile_k = _pick_k_tile(n_pad)
        h = _graphconv_layer(a_bf16, x_bf16, w1b, b1r, activation="relu",
                             out_dtype=jnp.bfloat16, tile_rows=tile_rows,
                             tile_k=tile_k, vmem_limit=vmem_limit)
        h = _graphconv_layer(a_bf16, h, w2b, b2r, activation="relu",
                             out_dtype=jnp.bfloat16, tile_rows=tile_rows,
                             tile_k=tile_k, vmem_limit=vmem_limit)
        out_pad = _graphconv_layer(a_bf16, h, w3p, b3p,
                                   activation="log_softmax",
                                   out_dtype=jnp.float32, tile_rows=tile_rows,
                                   tile_k=tile_k, vmem_limit=vmem_limit)
    return out_pad[:n, :out_ch]


# ---------------------------------------------------------------------------
# Parameter / graph construction + pure-JAX reference (plain JAX glue)
# ---------------------------------------------------------------------------

def glorot(key, shape):
    fan_in, fan_out = shape
    limit = (6.0 / (fan_in + fan_out)) ** 0.5
    return jax.random.uniform(key, shape, jnp.float32, -limit, limit)


def make_params(key, in_channels, hidden_channels, out_channels):
    k1, k2, k3 = jax.random.split(key, 3)
    w1 = glorot(k1, (in_channels, hidden_channels))
    b1 = jnp.zeros((hidden_channels,), jnp.float32)
    w2 = glorot(k2, (hidden_channels, hidden_channels))
    b2 = jnp.zeros((hidden_channels,), jnp.float32)
    w3 = glorot(k3, (hidden_channels, out_channels))
    b3 = jnp.zeros((out_channels,), jnp.float32)
    return (w1, b1, w2, b2, w3, b3)


def make_normalized_adjacency(key, n):
    # Random symmetric graph with self-loops, then symmetric normalization
    # Ahat = D^-1/2 (A + I) D^-1/2 (DGL GraphConv norm='both').
    p = 0.1
    upper = (jax.random.uniform(key, (n, n)) < p).astype(jnp.float32)
    a = jnp.triu(upper, k=1)
    a = a + a.T + jnp.eye(n, dtype=jnp.float32)
    deg = jnp.sum(a, axis=1)
    d_inv_sqrt = 1.0 / jnp.sqrt(deg)
    return a * d_inv_sqrt[:, None] * d_inv_sqrt[None, :]


def reference_forward(a, x, params):
    """f32 pure-JAX reference of the PyTorch module."""
    w1, b1, w2, b2, w3, b3 = params
    h = jax.nn.relu(a @ (x @ w1) + b1)
    h = jax.nn.relu(a @ (h @ w2) + b2)
    z = a @ (h @ w3) + b3
    return jax.nn.log_softmax(z, axis=1)


if __name__ == "__main__":
    N = 64               # number of graph nodes (padded to 128 internally)
    IN_CH = 16
    HIDDEN_CH = 32
    OUT_CH = 8

    key = jax.random.PRNGKey(0)
    k_graph, k_feat, k_params = jax.random.split(key, 3)

    a_norm = make_normalized_adjacency(k_graph, N)
    features = jax.random.normal(k_feat, (N, IN_CH), jnp.float32)
    params = make_params(k_params, IN_CH, HIDDEN_CH, OUT_CH)

    # Auto path (fused at this size) and the forced row x K tiled path.
    out = jax.block_until_ready(dgl_net_forward(a_norm, features, params))
    out_tiled = jax.block_until_ready(
        dgl_net_forward(a_norm, features, params, force_tiled=True))
    ref = reference_forward(a_norm, features, params)

    assert out.shape == (N, OUT_CH)
    # log_softmax rows exp-sum to 1.
    assert bool(jnp.allclose(jnp.exp(out).sum(axis=1), 1.0, atol=1e-3))
    # Both execution paths agree.
    assert bool(jnp.allclose(out, out_tiled, atol=1e-3, rtol=1e-3))
    # Close to the f32 reference (bf16 adjacency / weights on the MXU).
    assert float(jnp.max(jnp.abs(out - ref))) < 0.1

    print("KERNEL_OK")
</pallas_src>

<mosaic_0001>
module attributes {stable_mosaic.version = 11 : i64} {
  func.func @gcn3_fused_kernel(%arg0: memref<128x128xbf16, #tpu.memory_space<vmem>>, %arg1: memref<128x16xbf16, #tpu.memory_space<vmem>>, %arg2: memref<16x32xbf16, #tpu.memory_space<vmem>>, %arg3: memref<1x32xf32, #tpu.memory_space<vmem>>, %arg4: memref<32x32xbf16, #tpu.memory_space<vmem>>, %arg5: memref<1x32xf32, #tpu.memory_space<vmem>>, %arg6: memref<32x128xbf16, #tpu.memory_space<vmem>>, %arg7: memref<1x128xf32, #tpu.memory_space<vmem>>, %arg8: memref<128x128xf32, #tpu.memory_space<vmem>>) attributes {dimension_semantics = [], scalar_prefetch = 0 : i64, scratch_operands = 0 : i64, tpu.core_type = #tpu.core_type<tc>} {
    %c0 = arith.constant 0 : index
    %c0_0 = arith.constant 0 : index
    %0 = vector.load %arg0[%c0, %c0_0] : memref<128x128xbf16, #tpu.memory_space<vmem>>, vector<128x128xbf16>
    %c0_1 = arith.constant 0 : index
    %c0_2 = arith.constant 0 : index
    %1 = vector.load %arg1[%c0_1, %c0_2] : memref<128x16xbf16, #tpu.memory_space<vmem>>, vector<128x16xbf16>
    %cst = arith.constant dense<0.000000e+00> : vector<128x16xf32>
    %2 = tpu.matmul %0, %1, %cst {dimension_numbers = #tpu.dot_dimension_numbers<[1], [0], [0], [1], [0, 0, 1, 1], [], []>} : vector<128x128xbf16>, vector<128x16xbf16>, vector<128x16xf32> -> vector<128x16xf32>
    %3 = arith.truncf %2 : vector<128x16xf32> to vector<128x16xbf16>
    %c0_3 = arith.constant 0 : index
    %c0_4 = arith.constant 0 : index
    %4 = vector.load %arg2[%c0_3, %c0_4] : memref<16x32xbf16, #tpu.memory_space<vmem>>, vector<16x32xbf16>
    %cst_5 = arith.constant dense<0.000000e+00> : vector<128x32xf32>
    %5 = tpu.matmul %3, %4, %cst_5 {dimension_numbers = #tpu.dot_dimension_numbers<[1], [0], [0], [1], [0, 0, 1, 1], [], []>} : vector<128x16xbf16>, vector<16x32xbf16>, vector<128x32xf32> -> vector<128x32xf32>
    %c0_6 = arith.constant 0 : index
    %c0_7 = arith.constant 0 : index
    %6 = vector.load %arg3[%c0_6, %c0_7] : memref<1x32xf32, #tpu.memory_space<vmem>>, vector<1x32xf32>
    %7 = vector.broadcast %6 : vector<1x32xf32> to vector<128x32xf32>
    %8 = arith.addf %5, %7 : vector<128x32xf32>
    %cst_8 = arith.constant 0.000000e+00 : f32
    %9 = vector.broadcast %cst_8 : f32 to vector<128x32xf32>
    %10 = arith.maximumf %8, %9 : vector<128x32xf32>
    %11 = arith.truncf %10 : vector<128x32xf32> to vector<128x32xbf16>
    %c0_9 = arith.constant 0 : index
    %c0_10 = arith.constant 0 : index
    %12 = vector.load %arg0[%c0_9, %c0_10] : memref<128x128xbf16, #tpu.memory_space<vmem>>, vector<128x128xbf16>
    %cst_11 = arith.constant dense<0.000000e+00> : vector<128x32xf32>
    %13 = tpu.matmul %12, %11, %cst_11 {dimension_numbers = #tpu.dot_dimension_numbers<[1], [0], [0], [1], [0, 0, 1, 1], [], []>} : vector<128x128xbf16>, vector<128x32xbf16>, vector<128x32xf32> -> vector<128x32xf32>
    %14 = arith.truncf %13 : vector<128x32xf32> to vector<128x32xbf16>
    %c0_12 = arith.constant 0 : index
    %c0_13 = arith.constant 0 : index
    %15 = vector.load %arg4[%c0_12, %c0_13] : memref<32x32xbf16, #tpu.memory_space<vmem>>, vector<32x32xbf16>
    %cst_14 = arith.constant dense<0.000000e+00> : vector<128x32xf32>
    %16 = tpu.matmul %14, %15, %cst_14 {dimension_numbers = #tpu.dot_dimension_numbers<[1], [0], [0], [1], [0, 0, 1, 1], [], []>} : vector<128x32xbf16>, vector<32x32xbf16>, vector<128x32xf32> -> vector<128x32xf32>
    %c0_15 = arith.constant 0 : index
    %c0_16 = arith.constant 0 : index
    %17 = vector.load %arg5[%c0_15, %c0_16] : memref<1x32xf32, #tpu.memory_space<vmem>>, vector<1x32xf32>
    %18 = vector.broadcast %17 : vector<1x32xf32> to vector<128x32xf32>
    %19 = arith.addf %16, %18 : vector<128x32xf32>
    %cst_17 = arith.constant 0.000000e+00 : f32
    %20 = vector.broadcast %cst_17 : f32 to vector<128x32xf32>
    %21 = arith.maximumf %19, %20 : vector<128x32xf32>
    %22 = arith.truncf %21 : vector<128x32xf32> to vector<128x32xbf16>
    %c0_18 = arith.constant 0 : index
    %c0_19 = arith.constant 0 : index
    %23 = vector.load %arg0[%c0_18, %c0_19] : memref<128x128xbf16, #tpu.memory_space<vmem>>, vector<128x128xbf16>
    %cst_20 = arith.constant dense<0.000000e+00> : vector<128x32xf32>
    %24 = tpu.matmul %23, %22, %cst_20 {dimension_numbers = #tpu.dot_dimension_numbers<[1], [0], [0], [1], [0, 0, 1, 1], [], []>} : vector<128x128xbf16>, vector<128x32xbf16>, vector<128x32xf32> -> vector<128x32xf32>
    %25 = arith.truncf %24 : vector<128x32xf32> to vector<128x32xbf16>
    %c0_21 = arith.constant 0 : index
    %c0_22 = arith.constant 0 : index
    %26 = vector.load %arg6[%c0_21, %c0_22] : memref<32x128xbf16, #tpu.memory_space<vmem>>, vector<32x128xbf16>
    %cst_23 = arith.constant dense<0.000000e+00> : vector<128x128xf32>
    %27 = tpu.matmul %25, %26, %cst_23 {dimension_numbers = #tpu.dot_dimension_numbers<[1], [0], [0], [1], [0, 0, 1, 1], [], []>} : vector<128x32xbf16>, vector<32x128xbf16>, vector<128x128xf32> -> vector<128x128xf32>
    %c0_24 = arith.constant 0 : index
    %c0_25 = arith.constant 0 : index
    %28 = vector.load %arg7[%c0_24, %c0_25] : memref<1x128xf32, #tpu.memory_space<vmem>>, vector<1x128xf32>
    %29 = vector.broadcast %28 : vector<1x128xf32> to vector<128x128xf32>
    %30 = arith.addf %27, %29 : vector<128x128xf32>
    %cst_26 = arith.constant dense<0xFF800000> : vector<128xf32>
    %31 = vector.multi_reduction <maximumf>, %30, %cst_26 [1] : vector<128x128xf32> to vector<128xf32>
    %32 = vector.shape_cast %31 : vector<128xf32> to vector<128x1xf32>
    %33 = vector.broadcast %32 : vector<128x1xf32> to vector<128x128xf32>
    %34 = arith.subf %30, %33 : vector<128x128xf32>
    %35 = math.exp %34 : vector<128x128xf32>
    %cst_27 = arith.constant dense<0.000000e+00> : vector<128xf32>
    %36 = vector.multi_reduction <add>, %35, %cst_27 [1] : vector<128x128xf32> to vector<128xf32>
    %37 = vector.shape_cast %36 : vector<128xf32> to vector<128x1xf32>
    %38 = math.log %37 : vector<128x1xf32>
    %39 = vector.broadcast %38 : vector<128x1xf32> to vector<128x128xf32>
    %40 = arith.subf %34, %39 : vector<128x128xf32>
    %c0_28 = arith.constant 0 : index
    %c0_29 = arith.constant 0 : index
    %41 = vector.load %arg8[%c0_28, %c0_29] : memref<128x128xf32, #tpu.memory_space<vmem>>, vector<128x128xf32>
    tpu.vector_store %arg8[%c0_28, %c0_29], %40 {strides = array<i32>} : memref<128x128xf32, #tpu.memory_space<vmem>>, vector<128x128xf32>,
    return
  }
}

</mosaic_0001>

<llo_original>
// kernel: tpu_custom_call.1
$region0: #{tpu_custom_call.1}
  #allocation0 [shape = 'u32[]', space=smem, size = 0x4, offset = 0x4, fixed_abs, tag = 'smem constant byte address 0x4 - core index']
  #allocation1 [shape = 'u32[144,128]{1,0:T(1,128)}', space=vmem, size = 0x12000, scoped, tag = 'internal scratch']
  %s0 = inlined_call_operand.vmem [shape: bf16[128,128], index: 0, kind: input, shape index: {}]
  %s1 = inlined_call_operand.vmem [shape: bf16[128,16], index: 1, kind: input, shape index: {}]
  %s2 = inlined_call_operand.hbm [shape: bf16[16,32], index: 2, kind: input, shape index: {}]
  %s3 = inlined_call_operand.vmem [shape: f32[1,32], index: 3, kind: input, shape index: {}]
  %s4 = inlined_call_operand.vmem [shape: bf16[32,32], index: 4, kind: input, shape index: {}]
  %s5 = inlined_call_operand.vmem [shape: f32[1,32], index: 5, kind: input, shape index: {}]
  %s6 = inlined_call_operand.hbm [shape: bf16[32,128], index: 6, kind: input, shape index: {}]
  %s7 = inlined_call_operand.vmem [shape: f32[1,128], index: 7, kind: input, shape index: {}]
  %s8 = inlined_call_operand.hbm [shape: f32[128,128], index: 8, kind: output, shape index: {}]
  %s9 = sld [smem:[#allocation0]]
  $region50: #{tpu_custom_call.1} parent=0
    _
  %s11 = ssub.s32 1, %s9
  %s12 = scalar_select 0, %s11, %s9
  $region1: #{tpu_custom_call.1} parent=0
    #allocation2 [shape = 'u8[4096]{0}', space=vmem, size = 0x1000, scoped, tag = 'input window, operand 2, single buffered']
    #allocation3 [shape = 's32[1]{0}', space=sflag, size = 0x4, scoped, tag = 'scoped memory for tpu_custom_call.1']
    #allocation4 [shape = 's32[1]{0}', space=sflag, size = 0x4, scoped, tag = 'scoped memory for tpu_custom_call.1']
    #allocation5 [shape = 'u8[8192]{0}', space=vmem, size = 0x2000, scoped, tag = 'input window, operand 6, single buffered']
    #allocation6 [shape = 's32[1]{0}', space=sflag, size = 0x4, scoped, tag = 'scoped memory for tpu_custom_call.1']
    #allocation7 [shape = 'u8[65536]{0}', space=vmem, size = 0x10000, scoped, tag = 'output window, operand 0, single buffered']
    %13 = vsyncpa [#allocation3], 0
    %14 = vsyncpa [#allocation6], 0
    %15 = vsyncpa [#allocation4], 0
    // Predicated region
    $region2: #{tpu_custom_call.1} parent=1 // pred_check
      _
    $region3: #{tpu_custom_call.1} parent=1 // pred_check_branch
      %17 = sbr.rel (0) target = $region5
    $region4: #{tpu_custom_call.1} parent=1 // pred_region
      _
    $region5: #{tpu_custom_call.1} parent=1 // pred_fallthru
      _
    // Predicated region
    $region6: #{tpu_custom_call.1} parent=1 // pred_check
      _
    $region7: #{tpu_custom_call.1} parent=1 // pred_check_branch
      %19 = sbr.rel (0) target = $region9
    $region8: #{tpu_custom_call.1} parent=1 // pred_region
      _
    $region9: #{tpu_custom_call.1} parent=1 // pred_fallthru
      _
    // Predicated region
    $region10: #{tpu_custom_call.1} parent=1 // pred_check
      _
    $region11: #{tpu_custom_call.1} parent=1 // pred_check_branch
      %21 = sbr.rel (0) target = $region13
    $region12: #{tpu_custom_call.1} parent=1 // pred_region
      %s23 = ssub.s32 128, 128
      %24 = vsyncadd [#allocation3], %s23
      %s25 = sshll.u32 [#allocation2], 4
      %s26 = int_to_ptr.vmem [resolvable:$true] %s25
      %31 = dma.hbm_to_vmem [thread:$0]  %s2, 128, %s26, [#allocation3], 64, 64, 4
    $region13: #{tpu_custom_call.1} parent=1 // pred_fallthru
      _
    // Predicated region
    $region14: #{tpu_custom_call.1} parent=1 // pred_check
      _
    $region15: #{tpu_custom_call.1} parent=1 // pred_check_branch
      %33 = sbr.rel (0) target = $region17
    $region16: #{tpu_custom_call.1} parent=1 // pred_region
      _
    $region17: #{tpu_custom_call.1} parent=1 // pred_fallthru
      _
    // Predicated region
    $region18: #{tpu_custom_call.1} parent=1 // pred_check
      _
    $region19: #{tpu_custom_call.1} parent=1 // pred_check_branch
      %35 = sbr.rel (0) target = $region21
    $region20: #{tpu_custom_call.1} parent=1 // pred_region
      _
    $region21: #{tpu_custom_call.1} parent=1 // pred_fallthru
      _
    // Predicated region
    $region22: #{tpu_custom_call.1} parent=1 // pred_check
      _
    $region23: #{tpu_custom_call.1} parent=1 // pred_check_branch
      %37 = sbr.rel (0) target = $region25
    $region24: #{tpu_custom_call.1} parent=1 // pred_region
      _
    $region25: #{tpu_custom_call.1} parent=1 // pred_fallthru
      _
    // Predicated region
    $region26: #{tpu_custom_call.1} parent=1 // pred_check
      _
    $region27: #{tpu_custom_call.1} parent=1 // pred_check_branch
      %39 = sbr.rel (0) target = $region29
    $region28: #{tpu_custom_call.1} parent=1 // pred_region
      %s41 = ssub.s32 256, 256
      %42 = vsyncadd [#allocation6], %s41
      %s43 = sshll.u32 [#allocation5], 4
      %s44 = int_to_ptr.vmem [resolvable:$true] %s43
      %49 = dma.hbm_to_vmem [thread:$0]  %s6, 256, %s44, [#allocation6], 64, 64, 4
    $region29: #{tpu_custom_call.1} parent=1 // pred_fallthru
      _
    // Predicated region
    $region30: #{tpu_custom_call.1} parent=1 // pred_check
      _
    $region31: #{tpu_custom_call.1} parent=1 // pred_check_branch
      %51 = sbr.rel (0) target = $region33
    $region32: #{tpu_custom_call.1} parent=1 // pred_region
      _
    $region33: #{tpu_custom_call.1} parent=1 // pred_fallthru
      _
    // Predicated region
    $region34: #{tpu_custom_call.1} parent=1 // pred_check
      _
    $region35: #{tpu_custom_call.1} parent=1 // pred_check_branch
      %53 = sbr.rel (0) target = $region37
    $region36: #{tpu_custom_call.1} parent=1 // pred_region
      %54 = dma.done [#allocation3], 128
    $region37: #{tpu_custom_call.1} parent=1 // pred_fallthru
      _
    // Predicated region
    $region38: #{tpu_custom_call.1} parent=1 // pred_check
      _
    $region39: #{tpu_custom_call.1} parent=1 // pred_check_branch
      %56 = sbr.rel (0) target = $region41
    $region40: #{tpu_custom_call.1} parent=1 // pred_region
      %57 = dma.done [#allocation6], 256
    $region41: #{tpu_custom_call.1} parent=1 // pred_fallthru
      _
    %v59 = vld [vmem:[%s0] sm:$0xf]
    %v60 = vld [vmem:[%s0 + $0x4] sm:$0xf]
    %v61 = vld [vmem:[%s0 + $0x8] sm:$0xf]
    %v62 = vld [vmem:[%s0 + $0xc] sm:$0xf]
    %v63 = vld [vmem:[%s0 + $0x10] sm:$0xf]
    %v64 = vld [vmem:[%s0 + $0x14] sm:$0xf]
    %v65 = vld [vmem:[%s0 + $0x18] sm:$0xf]
    %v66 = vld [vmem:[%s0 + $0x1c] sm:$0xf]
    %v67 = vld [vmem:[%s0 + $0x20] sm:$0xf]
    %v68 = vld [vmem:[%s0 + $0x24] sm:$0xf]
    %v69 = vld [vmem:[%s0 + $0x28] sm:$0xf]
    %v70 = vld [vmem:[%s0 + $0x2c] sm:$0xf]
    %v71 = vld [vmem:[%s0 + $0x30] sm:$0xf]
    %v72 = vld [vmem:[%s0 + $0x34] sm:$0xf]
    %v73 = vld [vmem:[%s0 + $0x38] sm:$0xf]
    %v74 = vld [vmem:[%s0 + $0x3c] sm:$0xf]
    %v75 = vld [vmem:[%s1] sm:$0xf]
    %v76 = vld [vmem:[%s1 + $0x4] sm:$0xf]
    %v77 = vld [vmem:[%s1 + $0x8] sm:$0xf]
    %v78 = vld [vmem:[%s1 + $0xc] sm:$0xf]
    %v79 = vld [vmem:[%s1 + $0x10] sm:$0xf]
    %v80 = vld [vmem:[%s1 + $0x14] sm:$0xf]
    %v81 = vld [vmem:[%s1 + $0x18] sm:$0xf]
    %v82 = vld [vmem:[%s1 + $0x1c] sm:$0xf]
    %v83 = vld [vmem:[%s1 + $0x20] sm:$0xf]
    %v84 = vld [vmem:[%s1 + $0x24] sm:$0xf]
    %v85 = vld [vmem:[%s1 + $0x28] sm:$0xf]
    %v86 = vld [vmem:[%s1 + $0x2c] sm:$0xf]
    %v87 = vld [vmem:[%s1 + $0x30] sm:$0xf]
    %v88 = vld [vmem:[%s1 + $0x34] sm:$0xf]
    %v89 = vld [vmem:[%s1 + $0x38] sm:$0xf]
    %v90 = vld [vmem:[%s1 + $0x3c] sm:$0xf]
    %v107 = vunpack.c.l.b16 %v59
    %v108 = vunpack.c.l.b16 %v60
    %v109 = vunpack.c.l.b16 %v61
    %v110 = vunpack.c.l.b16 %v62
    %v111 = vunpack.c.l.b16 %v63
    %v112 = vunpack.c.l.b16 %v64
    %v113 = vunpack.c.l.b16 %v65
    %v114 = vunpack.c.l.b16 %v66
    %v115 = vunpack.c.l.b16 %v67
    %v116 = vunpack.c.l.b16 %v68
    %v117 = vunpack.c.l.b16 %v69
    %v118 = vunpack.c.l.b16 %v70
    %v119 = vunpack.c.l.b16 %v71
    %v120 = vunpack.c.l.b16 %v72
    %v121 = vunpack.c.l.b16 %v73
    %v122 = vunpack.c.l.b16 %v74
    %v123 = vpack.c.b16 %v108, %v107
    %v124 = vpack.c.b16 %v110, %v109
    %v125 = vpack.c.b16 %v112, %v111
    %v126 = vpack.c.b16 %v114, %v113
    %v127 = vpack.c.b16 %v116, %v115
    %v128 = vpack.c.b16 %v118, %v117
    %v129 = vpack.c.b16 %v120, %v119
    %v130 = vpack.c.b16 %v122, %v121
    %v155 = vunpack.c.l.b16 %v75
    %v156 = vunpack.c.l.b16 %v76
    %v157 = vunpack.c.l.b16 %v77
    %v158 = vunpack.c.l.b16 %v78
    %v159 = vunpack.c.l.b16 %v79
    %v160 = vunpack.c.l.b16 %v80
    %v161 = vunpack.c.l.b16 %v81
    %v162 = vunpack.c.l.b16 %v82
    %v163 = vunpack.c.l.b16 %v83
    %v164 = vunpack.c.l.b16 %v84
    %v165 = vunpack.c.l.b16 %v85
    %v166 = vunpack.c.l.b16 %v86
    %v167 = vunpack.c.l.b16 %v87
    %v168 = vunpack.c.l.b16 %v88
    %v169 = vunpack.c.l.b16 %v89
    %v170 = vunpack.c.l.b16 %v90
    %v171 = vpack.c.b16 %v156, %v155
    %v172 = vpack.c.b16 %v158, %v157
    %v173 = vpack.c.b16 %v160, %v159
    %v174 = vpack.c.b16 %v162, %v161
    %v175 = vpack.c.b16 %v164, %v163
    %v176 = vpack.c.b16 %v166, %v165
    %v177 = vpack.c.b16 %v168, %v167
    %v178 = vpack.c.b16 %v170, %v169
    %187 = vmatprep.subr.bf16.mxu0 0
    %188 = vmatpush1.bf16.msra.mxu0 %v171
    %189 = vmatprep.subr.bf16.mxu0 0
    %190 = vmatpush1.bf16.msra.mxu0 %v172
    %191 = vmatprep.subr.bf16.mxu0 0
    %192 = vmatpush1.bf16.msra.mxu0 %v173
    %193 = vmatprep.subr.bf16.mxu0 0
    %194 = vmatpush1.bf16.msra.mxu0 %v174
    %195 = vmatprep.subr.bf16.mxu0 0
    %196 = vmatpush1.bf16.msra.mxu0 %v175
    %197 = vmatprep.subr.bf16.mxu0 0
    %198 = vmatpush1.bf16.msra.mxu0 %v176
    %199 = vmatprep.subr.bf16.mxu0 0
    %200 = vmatpush1.bf16.msra.mxu0 %v177
    %201 = vmatprep.subr.bf16.mxu0 0
    %202 = vmatpush1.bf16.msra.mxu0 %v178
    %203 = vmatprep.subr.bf16.mxu0 0
    %204 = vmatpush1.bf16.msra.mxu0 0
    %205 = vmatprep.subr.bf16.mxu0 0
    %206 = vmatpush1.bf16.msra.mxu0 0
    %207 = vmatprep.subr.bf16.mxu0 0
    %208 = vmatpush1.bf16.msra.mxu0 0
    %209 = vmatprep.subr.bf16.mxu0 0
    %210 = vmatpush1.bf16.msra.mxu0 0
    %211 = vmatprep.subr.bf16.mxu0 0
    %212 = vmatpush1.bf16.msra.mxu0 0
    %213 = vmatprep.subr.bf16.mxu0 0
    %214 = vmatpush1.bf16.msra.mxu0 0
    %215 = vmatprep.subr.bf16.mxu0 0
    %216 = vmatpush1.bf16.msra.mxu0 0
    %217 = vmatprep.subr.bf16.mxu0 0
    %218 = vmatpush1.bf16.msra.mxu0 0
    %219 = vmatprep.mubr.bf16.mxu0 0
    %220 = vmatmul.mubr.bf16.gmra.mrb[0].mxu0 %v123
    %v221 = vpop.f32.mrb[0].mxu0
    %v222 = vadd.f32 0.0, %v221
    %v223 = vpop.f32.mrb[0].mxu0
    %v224 = vpop.f32.mrb[0].mxu0
    %v225 = vadd.f32 0.0, %v224
    %v226 = vpop.f32.mrb[0].mxu0
    %227 = vmatprep.mubr.bf16.mxu0 0
    %228 = vmatmul.mubr.bf16.gmra.mrb[0].mxu0 %v124
    %v229 = vpop.f32.mrb[0].mxu0
    %v230 = vadd.f32 0.0, %v229
    %v231 = vpop.f32.mrb[0].mxu0
    %v232 = vpop.f32.mrb[0].mxu0
    %v233 = vadd.f32 0.0, %v232
    %v234 = vpop.f32.mrb[0].mxu0
    %235 = vmatprep.mubr.bf16.mxu0 0
    %236 = vmatmul.mubr.bf16.gmra.mrb[0].mxu0 %v125
    %v237 = vpop.f32.mrb[0].mxu0
    %v238 = vadd.f32 0.0, %v237
    %v239 = vpop.f32.mrb[0].mxu0
    %v240 = vpop.f32.mrb[0].mxu0
    %v241 = vadd.f32 0.0, %v240
    %v242 = vpop.f32.mrb[0].mxu0
    %243 = vmatprep.mubr.bf16.mxu0 0
    %244 = vmatmul.mubr.bf16.gmra.mrb[0].mxu0 %v126
    %v245 = vpop.f32.mrb[0].mxu0
    %v246 = vadd.f32 0.0, %v245
    %v247 = vpop.f32.mrb[0].mxu0
    %v248 = vpop.f32.mrb[0].mxu0
    %v249 = vadd.f32 0.0, %v248
    %v250 = vpop.f32.mrb[0].mxu0
    %251 = vmatprep.mubr.bf16.mxu0 0
    %252 = vmatmul.mubr.bf16.gmra.mrb[0].mxu0 %v127
    %v253 = vpop.f32.mrb[0].mxu0
    %v254 = vadd.f32 0.0, %v253
    %v255 = vpop.f32.mrb[0].mxu0
    %v256 = vpop.f32.mrb[0].mxu0
    %v257 = vadd.f32 0.0, %v256
    %v258 = vpop.f32.mrb[0].mxu0
    %259 = vmatprep.mubr.bf16.mxu0 0
    %260 = vmatmul.mubr.bf16.gmra.mrb[0].mxu0 %v128
    %v261 = vpop.f32.mrb[0].mxu0
    %v262 = vadd.f32 0.0, %v261
    %v263 = vpop.f32.mrb[0].mxu0
    %v264 = vpop.f32.mrb[0].mxu0
    %v265 = vadd.f32 0.0, %v264
    %v266 = vpop.f32.mrb[0].mxu0
    %267 = vmatprep.mubr.bf16.mxu0 0
    %268 = vmatmul.mubr.bf16.gmra.mrb[0].mxu0 %v129
    %v269 = vpop.f32.mrb[0].mxu0
    %v270 = vadd.f32 0.0, %v269
    %v271 = vpop.f32.mrb[0].mxu0
    %v272 = vpop.f32.mrb[0].mxu0
    %v273 = vadd.f32 0.0, %v272
    %v274 = vpop.f32.mrb[0].mxu0
    %275 = vmatprep.mubr.bf16.mxu0 0
    %276 = vmatmul.mubr.bf16.gmra.mrb[0].mxu0 %v130
    %v277 = vpop.f32.mrb[0].mxu0
    %v278 = vadd.f32 0.0, %v277
    %v279 = vpop.f32.mrb[0].mxu0
    %v280 = vpop.f32.mrb[0].mxu0
    %v281 = vadd.f32 0.0, %v280
    %v282 = vpop.f32.mrb[0].mxu0
    %283 = vdwg.mxu0
    %v284 = vpack.c.bf16 %v225, %v222
    %v285 = vpack.c.bf16 %v233, %v230
    %v286 = vpack.c.bf16 %v241, %v238
    %v287 = vpack.c.bf16 %v249, %v246
    %v288 = vpack.c.bf16 %v257, %v254
    %v289 = vpack.c.bf16 %v265, %v262
    %v290 = vpack.c.bf16 %v273, %v270
    %v291 = vpack.c.bf16 %v281, %v278
    %v292 = vld [vmem:[#allocation2] sm:$0xf]
    %v293 = vld [vmem:[#allocation2 + $0x4] sm:$0xf]
    %v294 = vld [vmem:[%s3] sm:$0x1]
    %v296 = vlaneseq
    %v297 = vshrl.u32 %v296, 7
    %v298 = vsub.s32 0, %v297
    %v299 = vrot.slane %v294, %v298
    %v303 = vunpack.c.l.b16 %v292
    %v304 = vunpack.c.l.b16 %v293
    %v305 = vpack.c.b16 %v304, %v303
    %vm307 = vcmask 130048
    %v309 = vsel %vm307, %v284, 0
    %v312 = vsel %vm307, %v285, 0
    %v315 = vsel %vm307, %v286, 0
    %v318 = vsel %vm307, %v287, 0
    %v321 = vsel %vm307, %v288, 0
    %v324 = vsel %vm307, %v289, 0
    %v327 = vsel %vm307, %v290, 0
    %v330 = vsel %vm307, %v291, 0
    %332 = vmatprep.subr.bf16.mxu0 0
    %333 = vmatpush1.bf16.msra.mxu0 %v305
    %334 = vmatprep.subr.bf16.mxu0 0
    %335 = vmatpush1.bf16.msra.mxu0 0
    %336 = vmatprep.subr.bf16.mxu0 0
    %337 = vmatpush1.bf16.msra.mxu0 0
    %338 = vmatprep.subr.bf16.mxu0 0
    %339 = vmatpush1.bf16.msra.mxu0 0
    %340 = vmatprep.subr.bf16.mxu0 0
    %341 = vmatpush1.bf16.msra.mxu0 0
    %342 = vmatprep.subr.bf16.mxu0 0
    %343 = vmatpush1.bf16.msra.mxu0 0
    %344 = vmatprep.subr.bf16.mxu0 0
    %345 = vmatpush1.bf16.msra.mxu0 0
    %346 = vmatprep.subr.bf16.mxu0 0
    %347 = vmatpush1.bf16.msra.mxu0 0
    %348 = vmatprep.subr.bf16.mxu0 0
    %349 = vmatpush1.bf16.msra.mxu0 0
    %350 = vmatprep.subr.bf16.mxu0 0
    %351 = vmatpush1.bf16.msra.mxu0 0
    %352 = vmatprep.subr.bf16.mxu0 0
    %353 = vmatpush1.bf16.msra.mxu0 0
    %354 = vmatprep.subr.bf16.mxu0 0
    %355 = vmatpush1.bf16.msra.mxu0 0
    %356 = vmatprep.subr.bf16.mxu0 0
    %357 = vmatpush1.bf16.msra.mxu0 0
    %358 = vmatprep.subr.bf16.mxu0 0
    %359 = vmatpush1.bf16.msra.mxu0 0
    %360 = vmatprep.subr.bf16.mxu0 0
    %361 = vmatpush1.bf16.msra.mxu0 0
    %362 = vmatprep.subr.bf16.mxu0 0
    %363 = vmatpush1.bf16.msra.mxu0 0
    %364 = vmatprep.mubr.bf16.mxu0 0
    %365 = vmatmul.mubr.bf16.gmra.mrb[0].mxu0 %v309
    %v366 = vpop.f32.mrb[0].mxu0
    %v367 = vadd.f32 %v299, %v366
    %v368 = vpop.f32.mrb[0].mxu0
    %v369 = vpop.f32.mrb[0].mxu0
    %v370 = vadd.f32 %v299, %v369
    %v371 = vpop.f32.mrb[0].mxu0
    %372 = vmatprep.mubr.bf16.mxu0 0
    %373 = vmatmul.mubr.bf16.gmra.mrb[0].mxu0 %v312
    %v374 = vpop.f32.mrb[0].mxu0
    %v375 = vadd.f32 %v299, %v374
    %v376 = vpop.f32.mrb[0].mxu0
    %v377 = vpop.f32.mrb[0].mxu0
    %v378 = vadd.f32 %v299, %v377
    %v379 = vpop.f32.mrb[0].mxu0
    %380 = vmatprep.mubr.bf16.mxu0 0
    %381 = vmatmul.mubr.bf16.gmra.mrb[0].mxu0 %v315
    %v382 = vpop.f32.mrb[0].mxu0
    %v383 = vadd.f32 %v299, %v382
    %v384 = vpop.f32.mrb[0].mxu0
    %v385 = vpop.f32.mrb[0].mxu0
    %v386 = vadd.f32 %v299, %v385
    %v387 = vpop.f32.mrb[0].mxu0
    %388 = vmatprep.mubr.bf16.mxu0 0
    %389 = vmatmul.mubr.bf16.gmra.mrb[0].mxu0 %v318
    %v390 = vpop.f32.mrb[0].mxu0
    %v391 = vadd.f32 %v299, %v390
    %v392 = vpop.f32.mrb[0].mxu0
    %v393 = vpop.f32.mrb[0].mxu0
    %v394 = vadd.f32 %v299, %v393
    %v395 = vpop.f32.mrb[0].mxu0
    %396 = vmatprep.mubr.bf16.mxu0 0
    %397 = vmatmul.mubr.bf16.gmra.mrb[0].mxu0 %v321
    %v398 = vpop.f32.mrb[0].mxu0
    %v399 = vadd.f32 %v299, %v398
    %v400 = vpop.f32.mrb[0].mxu0
    %v401 = vpop.f32.mrb[0].mxu0
    %v402 = vadd.f32 %v299, %v401
    %v403 = vpop.f32.mrb[0].mxu0
    %404 = vmatprep.mubr.bf16.mxu0 0
    %405 = vmatmul.mubr.bf16.gmra.mrb[0].mxu0 %v324
    %v406 = vpop.f32.mrb[0].mxu0
    %v407 = vadd.f32 %v299, %v406
    %v408 = vpop.f32.mrb[0].mxu0
    %v409 = vpop.f32.mrb[0].mxu0
    %v410 = vadd.f32 %v299, %v409
    %v411 = vpop.f32.mrb[0].mxu0
    %412 = vmatprep.mubr.bf16.mxu0 0
    %413 = vmatmul.mubr.bf16.gmra.mrb[0].mxu0 %v327
    %v414 = vpop.f32.mrb[0].mxu0
    %v415 = vadd.f32 %v299, %v414
    %v416 = vpop.f32.mrb[0].mxu0
    %v417 = vpop.f32.mrb[0].mxu0
    %v418 = vadd.f32 %v299, %v417
    %v419 = vpop.f32.mrb[0].mxu0
    %420 = vmatprep.mubr.bf16.mxu0 0
    %421 = vmatmul.mubr.bf16.gmra.mrb[0].mxu0 %v330
    %v422 = vpop.f32.mrb[0].mxu0
    %v423 = vadd.f32 %v299, %v422
    %v424 = vpop.f32.mrb[0].mxu0
    %v425 = vpop.f32.mrb[0].mxu0
    %v426 = vadd.f32 %v299, %v425
    %v427 = vpop.f32.mrb[0].mxu0
    %428 = vdwg.mxu0
    %v429 = vmax.f32 %v367, 0.0
    %v430 = vmax.f32 %v370, 0.0
    %v431 = vmax.f32 %v375, 0.0
    %v432 = vmax.f32 %v378, 0.0
    %v433 = vmax.f32 %v383, 0.0
    %v434 = vmax.f32 %v386, 0.0
    %v435 = vmax.f32 %v391, 0.0
    %v436 = vmax.f32 %v394, 0.0
    %v437 = vmax.f32 %v399, 0.0
    %v438 = vmax.f32 %v402, 0.0
    %v439 = vmax.f32 %v407, 0.0
    %v440 = vmax.f32 %v410, 0.0
    %v441 = vmax.f32 %v415, 0.0
    %v442 = vmax.f32 %v418, 0.0
    %v443 = vmax.f32 %v423, 0.0
    %v444 = vmax.f32 %v426, 0.0
    %v445 = vpack.c.bf16 %v430, %v429
    %v446 = vpack.c.bf16 %v432, %v431
    %v447 = vpack.c.bf16 %v434, %v433
    %v448 = vpack.c.bf16 %v436, %v435
    %v449 = vpack.c.bf16 %v438, %v437
    %v450 = vpack.c.bf16 %v440, %v439
    %v451 = vpack.c.bf16 %v442, %v441
    %v452 = vpack.c.bf16 %v444, %v443
    %453 = vmatprep.subr.bf16.mxu0 0
    %454 = vmatpush1.bf16.msra.mxu0 %v445
    %455 = vmatprep.subr.bf16.mxu0 0
    %456 = vmatpush1.bf16.msra.mxu0 %v446
    %457 = vmatprep.subr.bf16.mxu0 0
    %458 = vmatpush1.bf16.msra.mxu0 %v447
    %459 = vmatprep.subr.bf16.mxu0 0
    %460 = vmatpush1.bf16.msra.mxu0 %v448
    %461 = vmatprep.subr.bf16.mxu0 0
    %462 = vmatpush1.bf16.msra.mxu0 %v449
    %463 = vmatprep.subr.bf16.mxu0 0
    %464 = vmatpush1.bf16.msra.mxu0 %v450
    %465 = vmatprep.subr.bf16.mxu0 0
    %466 = vmatpush1.bf16.msra.mxu0 %v451
    %467 = vmatprep.subr.bf16.mxu0 0
    %468 = vmatpush1.bf16.msra.mxu0 %v452
    %469 = vmatprep.subr.bf16.mxu0 0
    %470 = vmatpush1.bf16.msra.mxu0 0
    %471 = vmatprep.subr.bf16.mxu0 0
    %472 = vmatpush1.bf16.msra.mxu0 0
    %473 = vmatprep.subr.bf16.mxu0 0
    %474 = vmatpush1.bf16.msra.mxu0 0
    %475 = vmatprep.subr.bf16.mxu0 0
    %476 = vmatpush1.bf16.msra.mxu0 0
    %477 = vmatprep.subr.bf16.mxu0 0
    %478 = vmatpush1.bf16.msra.mxu0 0
    %479 = vmatprep.subr.bf16.mxu0 0
    %480 = vmatpush1.bf16.msra.mxu0 0
    %481 = vmatprep.subr.bf16.mxu0 0
    %482 = vmatpush1.bf16.msra.mxu0 0
    %483 = vmatprep.subr.bf16.mxu0 0
    %484 = vmatpush1.bf16.msra.mxu0 0
    %485 = vmatprep.mubr.bf16.mxu0 0
    %486 = vmatmul.mubr.bf16.gmra.mrb[0].mxu0 %v123
    %v487 = vpop.f32.mrb[0].mxu0
    %v488 = vadd.f32 0.0, %v487
    %v489 = vpop.f32.mrb[0].mxu0
    %v490 = vpop.f32.mrb[0].mxu0
    %v491 = vadd.f32 0.0, %v490
    %v492 = vpop.f32.mrb[0].mxu0
    %493 = vmatprep.mubr.bf16.mxu0 0
    %494 = vmatmul.mubr.bf16.gmra.mrb[0].mxu0 %v124
    %v495 = vpop.f32.mrb[0].mxu0
    %v496 = vadd.f32 0.0, %v495
    %v497 = vpop.f32.mrb[0].mxu0
    %v498 = vpop.f32.mrb[0].mxu0
    %v499 = vadd.f32 0.0, %v498
    %v500 = vpop.f32.mrb[0].mxu0
    %501 = vmatprep.mubr.bf16.mxu0 0
    %502 = vmatmul.mubr.bf16.gmra.mrb[0].mxu0 %v125
    %v503 = vpop.f32.mrb[0].mxu0
    %v504 = vadd.f32 0.0, %v503
    %v505 = vpop.f32.mrb[0].mxu0
    %v506 = vpop.f32.mrb[0].mxu0
    %v507 = vadd.f32 0.0, %v506
    %v508 = vpop.f32.mrb[0].mxu0
    %509 = vmatprep.mubr.bf16.mxu0 0
    %510 = vmatmul.mubr.bf16.gmra.mrb[0].mxu0 %v126
    %v511 = vpop.f32.mrb[0].mxu0
    %v512 = vadd.f32 0.0, %v511
    %v513 = vpop.f32.mrb[0].mxu0
    %v514 = vpop.f32.mrb[0].mxu0
    %v515 = vadd.f32 0.0, %v514
    %v516 = vpop.f32.mrb[0].mxu0
    %517 = vmatprep.mubr.bf16.mxu0 0
    %518 = vmatmul.mubr.bf16.gmra.mrb[0].mxu0 %v127
    %v519 = vpop.f32.mrb[0].mxu0
    %v520 = vadd.f32 0.0, %v519
    %v521 = vpop.f32.mrb[0].mxu0
    %v522 = vpop.f32.mrb[0].mxu0
    %v523 = vadd.f32 0.0, %v522
    %v524 = vpop.f32.mrb[0].mxu0
    %525 = vmatprep.mubr.bf16.mxu0 0
    %526 = vmatmul.mubr.bf16.gmra.mrb[0].mxu0 %v128
    %v527 = vpop.f32.mrb[0].mxu0
    %v528 = vadd.f32 0.0, %v527
    %v529 = vpop.f32.mrb[0].mxu0
    %v530 = vpop.f32.mrb[0].mxu0
    %v531 = vadd.f32 0.0, %v530
    %v532 = vpop.f32.mrb[0].mxu0
    %533 = vmatprep.mubr.bf16.mxu0 0
    %534 = vmatmul.mubr.bf16.gmra.mrb[0].mxu0 %v129
    %v535 = vpop.f32.mrb[0].mxu0
    %v536 = vadd.f32 0.0, %v535
    %v537 = vpop.f32.mrb[0].mxu0
    %v538 = vpop.f32.mrb[0].mxu0
    %v539 = vadd.f32 0.0, %v538
    %v540 = vpop.f32.mrb[0].mxu0
    %541 = vmatprep.mubr.bf16.mxu0 0
    %542 = vmatmul.mubr.bf16.gmra.mrb[0].mxu0 %v130
    %v543 = vpop.f32.mrb[0].mxu0
    %v544 = vadd.f32 0.0, %v543
    %v545 = vpop.f32.mrb[0].mxu0
    %v546 = vpop.f32.mrb[0].mxu0
    %v547 = vadd.f32 0.0, %v546
    %v548 = vpop.f32.mrb[0].mxu0
    %549 = vdwg.mxu0
    %v550 = vpack.c.bf16 %v491, %v488
    %v551 = vpack.c.bf16 %v499, %v496
    %v552 = vpack.c.bf16 %v507, %v504
    %v553 = vpack.c.bf16 %v515, %v512
    %v554 = vpack.c.bf16 %v523, %v520
    %v555 = vpack.c.bf16 %v531, %v528
    %v556 = vpack.c.bf16 %v539, %v536
    %v557 = vpack.c.bf16 %v547, %v544
    %v558 = vld [vmem:[%s4] sm:$0xf]
    %v559 = vld [vmem:[%s4 + $0x4] sm:$0xf]
    %v560 = vld [vmem:[%s4 + $0x8] sm:$0xf]
    %v561 = vld [vmem:[%s4 + $0xc] sm:$0xf]
    %v562 = vld [vmem:[%s5] sm:$0x1]
    %v564 = vlaneseq
    %v565 = vshrl.u32 %v564, 7
    %v566 = vsub.s32 0, %v565
    %v567 = vrot.slane %v562, %v566
    %v573 = vunpack.c.l.b16 %v558
    %v574 = vunpack.c.l.b16 %v559
    %v575 = vunpack.c.l.b16 %v560
    %v576 = vunpack.c.l.b16 %v561
    %v577 = vpack.c.b16 %v574, %v573
    %v578 = vpack.c.b16 %v576, %v575
    %vm581 = vcmask 261120
    %v583 = vsel %vm581, %v550, 0
    %v586 = vsel %vm581, %v551, 0
    %v589 = vsel %vm581, %v552, 0
    %v592 = vsel %vm581, %v553, 0
    %v595 = vsel %vm581, %v554, 0
    %v598 = vsel %vm581, %v555, 0
    %v601 = vsel %vm581, %v556, 0
    %v604 = vsel %vm581, %v557, 0
    %606 = vmatprep.subr.bf16.mxu0 0
    %607 = vmatpush1.bf16.msra.mxu0 %v577
    %608 = vmatprep.subr.bf16.mxu0 0
    %609 = vmatpush1.bf16.msra.mxu0 %v578
    %610 = vmatprep.subr.bf16.mxu0 0
    %611 = vmatpush1.bf16.msra.mxu0 0
    %612 = vmatprep.subr.bf16.mxu0 0
    %613 = vmatpush1.bf16.msra.mxu0 0
    %614 = vmatprep.subr.bf16.mxu0 0
    %615 = vmatpush1.bf16.msra.mxu0 0
    %616 = vmatprep.subr.bf16.mxu0 0
    %617 = vmatpush1.bf16.msra.mxu0 0
    %618 = vmatprep.subr.bf16.mxu0 0
    %619 = vmatpush1.bf16.msra.mxu0 0
    %620 = vmatprep.subr.bf16.mxu0 0
    %621 = vmatpush1.bf16.msra.mxu0 0
    %622 = vmatprep.subr.bf16.mxu0 0
    %623 = vmatpush1.bf16.msra.mxu0 0
    %624 = vmatprep.subr.bf16.mxu0 0
    %625 = vmatpush1.bf16.msra.mxu0 0
    %626 = vmatprep.subr.bf16.mxu0 0
    %627 = vmatpush1.bf16.msra.mxu0 0
    %628 = vmatprep.subr.bf16.mxu0 0
    %629 = vmatpush1.bf16.msra.mxu0 0
    %630 = vmatprep.subr.bf16.mxu0 0
    %631 = vmatpush1.bf16.msra.mxu0 0
    %632 = vmatprep.subr.bf16.mxu0 0
    %633 = vmatpush1.bf16.msra.mxu0 0
    %634 = vmatprep.subr.bf16.mxu0 0
    %635 = vmatpush1.bf16.msra.mxu0 0
    %636 = vmatprep.subr.bf16.mxu0 0
    %637 = vmatpush1.bf16.msra.mxu0 0
    %638 = vmatprep.mubr.bf16.mxu0 0
    %639 = vmatmul.mubr.bf16.gmra.mrb[0].mxu0 %v583
    %v640 = vpop.f32.mrb[0].mxu0
    %v641 = vadd.f32 %v567, %v640
    %v642 = vpop.f32.mrb[0].mxu0
    %v643 = vpop.f32.mrb[0].mxu0
    %v644 = vadd.f32 %v567, %v643
    %v645 = vpop.f32.mrb[0].mxu0
    %646 = vmatprep.mubr.bf16.mxu0 0
    %647 = vmatmul.mubr.bf16.gmra.mrb[0].mxu0 %v586
    %v648 = vpop.f32.mrb[0].mxu0
    %v649 = vadd.f32 %v567, %v648
    %v650 = vpop.f32.mrb[0].mxu0
    %v651 = vpop.f32.mrb[0].mxu0
    %v652 = vadd.f32 %v567, %v651
    %v653 = vpop.f32.mrb[0].mxu0
    %654 = vmatprep.mubr.bf16.mxu0 0
    %655 = vmatmul.mubr.bf16.gmra.mrb[0].mxu0 %v589
    %v656 = vpop.f32.mrb[0].mxu0
    %v657 = vadd.f32 %v567, %v656
    %v658 = vpop.f32.mrb[0].mxu0
    %v659 = vpop.f32.mrb[0].mxu0
    %v660 = vadd.f32 %v567, %v659
    %v661 = vpop.f32.mrb[0].mxu0
    %662 = vmatprep.mubr.bf16.mxu0 0
    %663 = vmatmul.mubr.bf16.gmra.mrb[0].mxu0 %v592
    %v664 = vpop.f32.mrb[0].mxu0
    %v665 = vadd.f32 %v567, %v664
    %v666 = vpop.f32.mrb[0].mxu0
    %v667 = vpop.f32.mrb[0].mxu0
    %v668 = vadd.f32 %v567, %v667
    %v669 = vpop.f32.mrb[0].mxu0
    %670 = vmatprep.mubr.bf16.mxu0 0
    %671 = vmatmul.mubr.bf16.gmra.mrb[0].mxu0 %v595
    %v672 = vpop.f32.mrb[0].mxu0
    %v673 = vadd.f32 %v567, %v672
    %v674 = vpop.f32.mrb[0].mxu0
    %v675 = vpop.f32.mrb[0].mxu0
    %v676 = vadd.f32 %v567, %v675
    %v677 = vpop.f32.mrb[0].mxu0
    %678 = vmatprep.mubr.bf16.mxu0 0
    %679 = vmatmul.mubr.bf16.gmra.mrb[0].mxu0 %v598
    %v680 = vpop.f32.mrb[0].mxu0
    %v681 = vadd.f32 %v567, %v680
    %v682 = vpop.f32.mrb[0].mxu0
    %v683 = vpop.f32.mrb[0].mxu0
    %v684 = vadd.f32 %v567, %v683
    %v685 = vpop.f32.mrb[0].mxu0
    %686 = vmatprep.mubr.bf16.mxu0 0
    %687 = vmatmul.mubr.bf16.gmra.mrb[0].mxu0 %v601
    %v688 = vpop.f32.mrb[0].mxu0
    %v689 = vadd.f32 %v567, %v688
    %v690 = vpop.f32.mrb[0].mxu0
    %v691 = vpop.f32.mrb[0].mxu0
    %v692 = vadd.f32 %v567, %v691
    %v693 = vpop.f32.mrb[0].mxu0
    %694 = vmatprep.mubr.bf16.mxu0 0
    %695 = vmatmul.mubr.bf16.gmra.mrb[0].mxu0 %v604
    %v696 = vpop.f32.mrb[0].mxu0
    %v697 = vadd.f32 %v567, %v696
    %v698 = vpop.f32.mrb[0].mxu0
    %v699 = vpop.f32.mrb[0].mxu0
    %v700 = vadd.f32 %v567, %v699
    %v701 = vpop.f32.mrb[0].mxu0
    %702 = vdwg.mxu0
    %v703 = vmax.f32 %v641, 0.0
    %v704 = vmax.f32 %v644, 0.0
    %v705 = vmax.f32 %v649, 0.0
    %v706 = vmax.f32 %v652, 0.0
    %v707 = vmax.f32 %v657, 0.0
    %v708 = vmax.f32 %v660, 0.0
    %v709 = vmax.f32 %v665, 0.0
    %v710 = vmax.f32 %v668, 0.0
    %v711 = vmax.f32 %v673, 0.0
    %v712 = vmax.f32 %v676, 0.0
    %v713 = vmax.f32 %v681, 0.0
    %v714 = vmax.f32 %v684, 0.0
    %v715 = vmax.f32 %v689, 0.0
    %v716 = vmax.f32 %v692, 0.0
    %v717 = vmax.f32 %v697, 0.0
    %v718 = vmax.f32 %v700, 0.0
    %v719 = vpack.c.bf16 %v704, %v703
    %v720 = vpack.c.bf16 %v706, %v705
    %v721 = vpack.c.bf16 %v708, %v707
    %v722 = vpack.c.bf16 %v710, %v709
    %v723 = vpack.c.bf16 %v712, %v711
    %v724 = vpack.c.bf16 %v714, %v713
    %v725 = vpack.c.bf16 %v716, %v715
    %v726 = vpack.c.bf16 %v718, %v717
    %727 = vmatprep.subr.bf16.mxu0 0
    %728 = vmatpush1.bf16.msra.mxu0 %v719
    %729 = vmatprep.subr.bf16.mxu0 0
    %730 = vmatpush1.bf16.msra.mxu0 %v720
    %731 = vmatprep.subr.bf16.mxu0 0
    %732 = vmatpush1.bf16.msra.mxu0 %v721
    %733 = vmatprep.subr.bf16.mxu0 0
    %734 = vmatpush1.bf16.msra.mxu0 %v722
    %735 = vmatprep.subr.bf16.mxu0 0
    %736 = vmatpush1.bf16.msra.mxu0 %v723
    %737 = vmatprep.subr.bf16.mxu0 0
    %738 = vmatpush1.bf16.msra.mxu0 %v724
    %739 = vmatprep.subr.bf16.mxu0 0
    %740 = vmatpush1.bf16.msra.mxu0 %v725
    %741 = vmatprep.subr.bf16.mxu0 0
    %742 = vmatpush1.bf16.msra.mxu0 %v726
    %743 = vmatprep.subr.bf16.mxu0 0
    %744 = vmatpush1.bf16.msra.mxu0 0
    %745 = vmatprep.subr.bf16.mxu0 0
    %746 = vmatpush1.bf16.msra.mxu0 0
    %747 = vmatprep.subr.bf16.mxu0 0
    %748 = vmatpush1.bf16.msra.mxu0 0
    %749 = vmatprep.subr.bf16.mxu0 0
    %750 = vmatpush1.bf16.msra.mxu0 0
    %751 = vmatprep.subr.bf16.mxu0 0
    %752 = vmatpush1.bf16.msra.mxu0 0
    %753 = vmatprep.subr.bf16.mxu0 0
    %754 = vmatpush1.bf16.msra.mxu0 0
    %755 = vmatprep.subr.bf16.mxu0 0
    %756 = vmatpush1.bf16.msra.mxu0 0
    %757 = vmatprep.subr.bf16.mxu0 0
    %758 = vmatpush1.bf16.msra.mxu0 0
    %759 = vmatprep.mubr.bf16.mxu0 0
    %760 = vmatmul.mubr.bf16.gmra.mrb[0].mxu0 %v123
    %v761 = vpop.f32.mrb[0].mxu0
    %v762 = vadd.f32 0.0, %v761
    %v763 = vpop.f32.mrb[0].mxu0
    %v764 = vpop.f32.mrb[0].mxu0
    %v765 = vadd.f32 0.0, %v764
    %v766 = vpop.f32.mrb[0].mxu0
    %767 = vmatprep.mubr.bf16.mxu0 0
    %768 = vmatmul.mubr.bf16.gmra.mrb[0].mxu0 %v124
    %v769 = vpop.f32.mrb[0].mxu0
    %v770 = vadd.f32 0.0, %v769
    %v771 = vpop.f32.mrb[0].mxu0
    %v772 = vpop.f32.mrb[0].mxu0
    %v773 = vadd.f32 0.0, %v772
    %v774 = vpop.f32.mrb[0].mxu0
    %775 = vmatprep.mubr.bf16.mxu0 0
    %776 = vmatmul.mubr.bf16.gmra.mrb[0].mxu0 %v125
    %v777 = vpop.f32.mrb[0].mxu0
    %v778 = vadd.f32 0.0, %v777
    %v779 = vpop.f32.mrb[0].mxu0
    %v780 = vpop.f32.mrb[0].mxu0
    %v781 = vadd.f32 0.0, %v780
    %v782 = vpop.f32.mrb[0].mxu0
    %783 = vmatprep.mubr.bf16.mxu0 0
    %784 = vmatmul.mubr.bf16.gmra.mrb[0].mxu0 %v126
    %v785 = vpop.f32.mrb[0].mxu0
    %v786 = vadd.f32 0.0, %v785
    %v787 = vpop.f32.mrb[0].mxu0
    %v788 = vpop.f32.mrb[0].mxu0
    %v789 = vadd.f32 0.0, %v788
    %v790 = vpop.f32.mrb[0].mxu0
    %791 = vmatprep.mubr.bf16.mxu0 0
    %792 = vmatmul.mubr.bf16.gmra.mrb[0].mxu0 %v127
    %v793 = vpop.f32.mrb[0].mxu0
    %v794 = vadd.f32 0.0, %v793
    %v795 = vpop.f32.mrb[0].mxu0
    %v796 = vpop.f32.mrb[0].mxu0
    %v797 = vadd.f32 0.0, %v796
    %v798 = vpop.f32.mrb[0].mxu0
    %799 = vmatprep.mubr.bf16.mxu0 0
    %800 = vmatmul.mubr.bf16.gmra.mrb[0].mxu0 %v128
    %v801 = vpop.f32.mrb[0].mxu0
    %v802 = vadd.f32 0.0, %v801
    %v803 = vpop.f32.mrb[0].mxu0
    %v804 = vpop.f32.mrb[0].mxu0
    %v805 = vadd.f32 0.0, %v804
    %v806 = vpop.f32.mrb[0].mxu0
    %807 = vmatprep.mubr.bf16.mxu0 0
    %808 = vmatmul.mubr.bf16.gmra.mrb[0].mxu0 %v129
    %v809 = vpop.f32.mrb[0].mxu0
    %v810 = vadd.f32 0.0, %v809
    %v811 = vpop.f32.mrb[0].mxu0
    %v812 = vpop.f32.mrb[0].mxu0
    %v813 = vadd.f32 0.0, %v812
    %v814 = vpop.f32.mrb[0].mxu0
    %815 = vmatprep.mubr.bf16.mxu0 0
    %816 = vmatmul.mubr.bf16.gmra.mrb[0].mxu0 %v130
    %v817 = vpop.f32.mrb[0].mxu0
    %v818 = vadd.f32 0.0, %v817
    %v819 = vpop.f32.mrb[0].mxu0
    %v820 = vpop.f32.mrb[0].mxu0
    %v821 = vadd.f32 0.0, %v820
    %v822 = vpop.f32.mrb[0].mxu0
    %823 = vdwg.mxu0
    %v824 = vpack.c.bf16 %v765, %v762
    %v825 = vpack.c.bf16 %v773, %v770
    %v826 = vpack.c.bf16 %v781, %v778
    %v827 = vpack.c.bf16 %v789, %v786
    %v828 = vpack.c.bf16 %v797, %v794
    %v829 = vpack.c.bf16 %v805, %v802
    %v830 = vpack.c.bf16 %v813, %v810
    %v831 = vpack.c.bf16 %v821, %v818
    %v832 = vld [vmem:[#allocation5] sm:$0xf]
    %v833 = vld [vmem:[#allocation5 + $0x4] sm:$0xf]
    %v834 = vld [vmem:[#allocation5 + $0x8] sm:$0xf]
    %v835 = vld [vmem:[#allocation5 + $0xc] sm:$0xf]
    %v836 = vld [vmem:[%s7] sm:$0x1]
    %v838 = vlaneseq
    %v839 = vshrl.u32 %v838, 7
    %v840 = vsub.s32 0, %v839
    %v841 = vrot.slane %v836, %v840
    %v847 = vunpack.c.l.b16 %v832
    %v848 = vunpack.c.l.b16 %v833
    %v849 = vunpack.c.l.b16 %v834
    %v850 = vunpack.c.l.b16 %v835
    %v851 = vpack.c.b16 %v848, %v847
    %v852 = vpack.c.b16 %v850, %v849
    %v856 = vsel %vm581, %v824, 0
    %v859 = vsel %vm581, %v825, 0
    %v862 = vsel %vm581, %v826, 0
    %v865 = vsel %vm581, %v827, 0
    %v868 = vsel %vm581, %v828, 0
    %v871 = vsel %vm581, %v829, 0
    %v874 = vsel %vm581, %v830, 0
    %v877 = vsel %vm581, %v831, 0
    %879 = vmatprep.subr.bf16.mxu0 0
    %880 = vmatpush1.bf16.msra.mxu0 %v851
    %881 = vmatprep.subr.bf16.mxu0 0
    %882 = vmatpush1.bf16.msra.mxu0 %v852
    %883 = vmatprep.subr.bf16.mxu0 0
    %884 = vmatpush1.bf16.msra.mxu0 0
    %885 = vmatprep.subr.bf16.mxu0 0
    %886 = vmatpush1.bf16.msra.mxu0 0
    %887 = vmatprep.subr.bf16.mxu0 0
    %888 = vmatpush1.bf16.msra.mxu0 0
    %889 = vmatprep.subr.bf16.mxu0 0
    %890 = vmatpush1.bf16.msra.mxu0 0
    %891 = vmatprep.subr.bf16.mxu0 0
    %892 = vmatpush1.bf16.msra.mxu0 0
    %893 = vmatprep.subr.bf16.mxu0 0
    %894 = vmatpush1.bf16.msra.mxu0 0
    %895 = vmatprep.subr.bf16.mxu0 0
    %896 = vmatpush1.bf16.msra.mxu0 0
    %897 = vmatprep.subr.bf16.mxu0 0
    %898 = vmatpush1.bf16.msra.mxu0 0
    %899 = vmatprep.subr.bf16.mxu0 0
    %900 = vmatpush1.bf16.msra.mxu0 0
    %901 = vmatprep.subr.bf16.mxu0 0
    %902 = vmatpush1.bf16.msra.mxu0 0
    %903 = vmatprep.subr.bf16.mxu0 0
    %904 = vmatpush1.bf16.msra.mxu0 0
    %905 = vmatprep.subr.bf16.mxu0 0
    %906 = vmatpush1.bf16.msra.mxu0 0
    %907 = vmatprep.subr.bf16.mxu0 0
    %908 = vmatpush1.bf16.msra.mxu0 0
    %909 = vmatprep.subr.bf16.mxu0 0
    %910 = vmatpush1.bf16.msra.mxu0 0
    %911 = vmatprep.mubr.bf16.mxu0 0
    %912 = vmatmul.mubr.bf16.gmra.mrb[0].mxu0 %v856
    %v913 = vpop.f32.mrb[0].mxu0
    %v914 = vadd.f32 %v841, %v913
    %v915 = vpop.f32.mrb[0].mxu0
    %v916 = vpop.f32.mrb[0].mxu0
    %v917 = vadd.f32 %v841, %v916
    %v918 = vpop.f32.mrb[0].mxu0
    %919 = vmatprep.mubr.bf16.mxu0 0
    %920 = vmatmul.mubr.bf16.gmra.mrb[0].mxu0 %v859
    %v921 = vpop.f32.mrb[0].mxu0
    %v922 = vadd.f32 %v841, %v921
    %v923 = vpop.f32.mrb[0].mxu0
    %v924 = vpop.f32.mrb[0].mxu0
    %v925 = vadd.f32 %v841, %v924
    %v926 = vpop.f32.mrb[0].mxu0
    %927 = vmatprep.mubr.bf16.mxu0 0
    %928 = vmatmul.mubr.bf16.gmra.mrb[0].mxu0 %v862
    %v929 = vpop.f32.mrb[0].mxu0
    %v930 = vadd.f32 %v841, %v929
    %v931 = vpop.f32.mrb[0].mxu0
    %v932 = vpop.f32.mrb[0].mxu0
    %v933 = vadd.f32 %v841, %v932
    %v934 = vpop.f32.mrb[0].mxu0
    %935 = vmatprep.mubr.bf16.mxu0 0
    %936 = vmatmul.mubr.bf16.gmra.mrb[0].mxu0 %v865
    %v937 = vpop.f32.mrb[0].mxu0
    %v938 = vadd.f32 %v841, %v937
    %v939 = vpop.f32.mrb[0].mxu0
    %v940 = vpop.f32.mrb[0].mxu0
    %v941 = vadd.f32 %v841, %v940
    %v942 = vpop.f32.mrb[0].mxu0
    %943 = vmatprep.mubr.bf16.mxu0 0
    %944 = vmatmul.mubr.bf16.gmra.mrb[0].mxu0 %v868
    %v945 = vpop.f32.mrb[0].mxu0
    %v946 = vadd.f32 %v841, %v945
    %v947 = vpop.f32.mrb[0].mxu0
    %v948 = vpop.f32.mrb[0].mxu0
    %v949 = vadd.f32 %v841, %v948
    %v950 = vpop.f32.mrb[0].mxu0
    %951 = vmatprep.mubr.bf16.mxu0 0
    %952 = vmatmul.mubr.bf16.gmra.mrb[0].mxu0 %v871
    %v953 = vpop.f32.mrb[0].mxu0
    %v954 = vadd.f32 %v841, %v953
    %v955 = vpop.f32.mrb[0].mxu0
    %v956 = vpop.f32.mrb[0].mxu0
    %v957 = vadd.f32 %v841, %v956
    %v958 = vpop.f32.mrb[0].mxu0
    %959 = vmatprep.mubr.bf16.mxu0 0
    %960 = vmatmul.mubr.bf16.gmra.mrb[0].mxu0 %v874
    %v961 = vpop.f32.mrb[0].mxu0
    %v962 = vadd.f32 %v841, %v961
    %v963 = vpop.f32.mrb[0].mxu0
    %v964 = vpop.f32.mrb[0].mxu0
    %v965 = vadd.f32 %v841, %v964
    %v966 = vpop.f32.mrb[0].mxu0
    %967 = vmatprep.mubr.bf16.mxu0 0
    %968 = vmatmul.mubr.bf16.gmra.mrb[0].mxu0 %v877
    %v969 = vpop.f32.mrb[0].mxu0
    %v970 = vadd.f32 %v841, %v969
    %v971 = vpop.f32.mrb[0].mxu0
    %v972 = vpop.f32.mrb[0].mxu0
    %v973 = vadd.f32 %v841, %v972
    %v974 = vpop.f32.mrb[0].mxu0
    %975 = vdwg.mxu0
    %976 = vmax.xlane.f32.xlu0 %v914
    %v977 = vpop.xlane.xlu0 %976
    %978 = vmax.xlane.f32.xlu0 %v917
    %v979 = vpop.xlane.xlu0 %978
    %980 = vmax.xlane.f32.xlu0 %v922
    %v981 = vpop.xlane.xlu0 %980
    %982 = vmax.xlane.f32.xlu0 %v925
    %v983 = vpop.xlane.xlu0 %982
    %984 = vmax.xlane.f32.xlu0 %v930
    %v985 = vpop.xlane.xlu0 %984
    %986 = vmax.xlane.f32.xlu0 %v933
    %v987 = vpop.xlane.xlu0 %986
    %988 = vmax.xlane.f32.xlu0 %v938
    %v989 = vpop.xlane.xlu0 %988
    %990 = vmax.xlane.f32.xlu0 %v941
    %v991 = vpop.xlane.xlu0 %990
    %992 = vmax.xlane.f32.xlu0 %v946
    %v993 = vpop.xlane.xlu0 %992
    %994 = vmax.xlane.f32.xlu0 %v949
    %v995 = vpop.xlane.xlu0 %994
    %996 = vmax.xlane.f32.xlu0 %v954
    %v997 = vpop.xlane.xlu0 %996
    %998 = vmax.xlane.f32.xlu0 %v957
    %v999 = vpop.xlane.xlu0 %998
    %1000 = vmax.xlane.f32.xlu0 %v962
    %v1001 = vpop.xlane.xlu0 %1000
    %1002 = vmax.xlane.f32.xlu0 %v965
    %v1003 = vpop.xlane.xlu0 %1002
    %1004 = vmax.xlane.f32.xlu0 %v970
    %v1005 = vpop.xlane.xlu0 %1004
    %1006 = vmax.xlane.f32.xlu0 %v973
    %v1007 = vpop.xlane.xlu0 %1006
    %v1008 = vsub.f32 %v914, %v977
    %v1009 = vsub.f32 %v917, %v979
    %v1010 = vsub.f32 %v922, %v981
    %v1011 = vsub.f32 %v925, %v983
    %v1012 = vsub.f32 %v930, %v985
    %v1013 = vsub.f32 %v933, %v987
    %v1014 = vsub.f32 %v938, %v989
    %v1015 = vsub.f32 %v941, %v991
    %v1016 = vsub.f32 %v946, %v993
    %v1017 = vsub.f32 %v949, %v995
    %v1018 = vsub.f32 %v954, %v997
    %v1019 = vsub.f32 %v957, %v999
    %v1020 = vsub.f32 %v962, %v1001
    %v1021 = vsub.f32 %v965, %v1003
    %v1022 = vsub.f32 %v970, %v1005
    %v1023 = vsub.f32 %v973, %v1007
    %v1024 = vmul.f32 %v1008, 1.442695
    %v1025 = vpow.pop %v1024
    %v1026 = vmul.f32 %v1009, 1.442695
    %v1027 = vpow.pop %v1026
    %v1028 = vmul.f32 %v1010, 1.442695
    %v1029 = vpow.pop %v1028
    %v1030 = vmul.f32 %v1011, 1.442695
    %v1031 = vpow.pop %v1030
    %v1032 = vmul.f32 %v1012, 1.442695
    %v1033 = vpow.pop %v1032
    %v1034 = vmul.f32 %v1013, 1.442695
    %v1035 = vpow.pop %v1034
    %v1036 = vmul.f32 %v1014, 1.442695
    %v1037 = vpow.pop %v1036
    %v1038 = vmul.f32 %v1015, 1.442695
    %v1039 = vpow.pop %v1038
    %v1040 = vmul.f32 %v1016, 1.442695
    %v1041 = vpow.pop %v1040
    %v1042 = vmul.f32 %v1017, 1.442695
    %v1043 = vpow.pop %v1042
    %v1044 = vmul.f32 %v1018, 1.442695
    %v1045 = vpow.pop %v1044
    %v1046 = vmul.f32 %v1019, 1.442695
    %v1047 = vpow.pop %v1046
    %v1048 = vmul.f32 %v1020, 1.442695
    %v1049 = vpow.pop %v1048
    %v1050 = vmul.f32 %v1021, 1.442695
    %v1051 = vpow.pop %v1050
    %v1052 = vmul.f32 %v1022, 1.442695
    %v1053 = vpow.pop %v1052
    %v1054 = vmul.f32 %v1023, 1.442695
    %v1055 = vpow.pop %v1054
    %1056 = vadd.xlane.f32.xlu0 %v1025
    %v1057 = vpop.xlane.xlu0 %1056
    %1058 = vadd.xlane.f32.xlu0 %v1027
    %v1059 = vpop.xlane.xlu0 %1058
    %1060 = vadd.xlane.f32.xlu0 %v1029
    %v1061 = vpop.xlane.xlu0 %1060
    %1062 = vadd.xlane.f32.xlu0 %v1031
    %v1063 = vpop.xlane.xlu0 %1062
    %1064 = vadd.xlane.f32.xlu0 %v1033
    %v1065 = vpop.xlane.xlu0 %1064
    %1066 = vadd.xlane.f32.xlu0 %v1035
    %v1067 = vpop.xlane.xlu0 %1066
    %1068 = vadd.xlane.f32.xlu0 %v1037
    %v1069 = vpop.xlane.xlu0 %1068
    %1070 = vadd.xlane.f32.xlu0 %v1039
    %v1071 = vpop.xlane.xlu0 %1070
    %1072 = vadd.xlane.f32.xlu0 %v1041
    %v1073 = vpop.xlane.xlu0 %1072
    %1074 = vadd.xlane.f32.xlu0 %v1043
    %v1075 = vpop.xlane.xlu0 %1074
    %1076 = vadd.xlane.f32.xlu0 %v1045
    %v1077 = vpop.xlane.xlu0 %1076
    %1078 = vadd.xlane.f32.xlu0 %v1047
    %v1079 = vpop.xlane.xlu0 %1078
    %1080 = vadd.xlane.f32.xlu0 %v1049
    %v1081 = vpop.xlane.xlu0 %1080
    %1082 = vadd.xlane.f32.xlu0 %v1051
    %v1083 = vpop.xlane.xlu0 %1082
    %1084 = vadd.xlane.f32.xlu0 %v1053
    %v1085 = vpop.xlane.xlu0 %1084
    %1086 = vadd.xlane.f32.xlu0 %v1055
    %v1087 = vpop.xlane.xlu0 %1086
    %v1088 = vlog2.pop %v1057
    %v1089 = vmul.f32 %v1088, 0.6931472
    %v1090 = vlog2.pop %v1059
    %v1091 = vmul.f32 %v1090, 0.6931472
    %v1092 = vlog2.pop %v1061
    %v1093 = vmul.f32 %v1092, 0.6931472
    %v1094 = vlog2.pop %v1063
    %v1095 = vmul.f32 %v1094, 0.6931472
    %v1096 = vlog2.pop %v1065
    %v1097 = vmul.f32 %v1096, 0.6931472
    %v1098 = vlog2.pop %v1067
    %v1099 = vmul.f32 %v1098, 0.6931472
    %v1100 = vlog2.pop %v1069
    %v1101 = vmul.f32 %v1100, 0.6931472
    %v1102 = vlog2.pop %v1071
    %v1103 = vmul.f32 %v1102, 0.6931472
    %v1104 = vlog2.pop %v1073
    %v1105 = vmul.f32 %v1104, 0.6931472
    %v1106 = vlog2.pop %v1075
    %v1107 = vmul.f32 %v1106, 0.6931472
    %v1108 = vlog2.pop %v1077
    %v1109 = vmul.f32 %v1108, 0.6931472
    %v1110 = vlog2.pop %v1079
    %v1111 = vmul.f32 %v1110, 0.6931472
    %v1112 = vlog2.pop %v1081
    %v1113 = vmul.f32 %v1112, 0.6931472
    %v1114 = vlog2.pop %v1083
    %v1115 = vmul.f32 %v1114, 0.6931472
    %v1116 = vlog2.pop %v1085
    %v1117 = vmul.f32 %v1116, 0.6931472
    %v1118 = vlog2.pop %v1087
    %v1119 = vmul.f32 %v1118, 0.6931472
    %v1120 = vsub.f32 %v1008, %v1089
    %v1121 = vsub.f32 %v1009, %v1091
    %v1122 = vsub.f32 %v1010, %v1093
    %v1123 = vsub.f32 %v1011, %v1095
    %v1124 = vsub.f32 %v1012, %v1097
    %v1125 = vsub.f32 %v1013, %v1099
    %v1126 = vsub.f32 %v1014, %v1101
    %v1127 = vsub.f32 %v1015, %v1103
    %v1128 = vsub.f32 %v1016, %v1105
    %v1129 = vsub.f32 %v1017, %v1107
    %v1130 = vsub.f32 %v1018, %v1109
    %v1131 = vsub.f32 %v1019, %v1111
    %v1132 = vsub.f32 %v1020, %v1113
    %v1133 = vsub.f32 %v1021, %v1115
    %v1134 = vsub.f32 %v1022, %v1117
    %v1135 = vsub.f32 %v1023, %v1119
    %1136 = vst [vmem:[#allocation7] sm:$0xff] %v1120
    %1137 = vst [vmem:[#allocation7 + $0x8] sm:$0xff] %v1121
    %1138 = vst [vmem:[#allocation7 + $0x10] sm:$0xff] %v1122
    %1139 = vst [vmem:[#allocation7 + $0x18] sm:$0xff] %v1123
    %1140 = vst [vmem:[#allocation7 + $0x20] sm:$0xff] %v1124
    %1141 = vst [vmem:[#allocation7 + $0x28] sm:$0xff] %v1125
    %1142 = vst [vmem:[#allocation7 + $0x30] sm:$0xff] %v1126
    %1143 = vst [vmem:[#allocation7 + $0x38] sm:$0xff] %v1127
    %1144 = vst [vmem:[#allocation7 + $0x40] sm:$0xff] %v1128
    %1145 = vst [vmem:[#allocation7 + $0x48] sm:$0xff] %v1129
    %1146 = vst [vmem:[#allocation7 + $0x50] sm:$0xff] %v1130
    %1147 = vst [vmem:[#allocation7 + $0x58] sm:$0xff] %v1131
    %1148 = vst [vmem:[#allocation7 + $0x60] sm:$0xff] %v1132
    %1149 = vst [vmem:[#allocation7 + $0x68] sm:$0xff] %v1133
    %1150 = vst [vmem:[#allocation7 + $0x70] sm:$0xff] %v1134
    %1151 = vst [vmem:[#allocation7 + $0x78] sm:$0xff] %v1135
    // Predicated region
    $region42: #{tpu_custom_call.1} parent=1 // pred_check
      _
    $region43: #{tpu_custom_call.1} parent=1 // pred_check_branch
      %1153 = sbr.rel (0) target = $region45
    $region44: #{tpu_custom_call.1} parent=1 // pred_region
      %s1155 = ssub.s32 2048, 2048
      %1156 = vsyncadd [#allocation4], %s1155
      %s1157 = sshll.u32 [#allocation7], 4
      %s1158 = int_to_ptr.vmem [resolvable:$true] %s1157
      %1163 = dma.vmem_to_hbm [thread:$0]  %s1158, 2048, %s8, [#allocation4], 128, 128, 8
    $region45: #{tpu_custom_call.1} parent=1 // pred_fallthru
      _
    // Predicated region
    $region46: #{tpu_custom_call.1} parent=1 // pred_check
      _
    $region47: #{tpu_custom_call.1} parent=1 // pred_check_branch
      %1165 = sbr.rel (0) target = $region49
    $region48: #{tpu_custom_call.1} parent=1 // pred_region
      %1166 = dma.done [#allocation4], 2048
    $region49: #{tpu_custom_call.1} parent=1 // pred_fallthru
      _
    %1167 = vsyncpa [#allocation3], 1
    %1168 = vsyncpa [#allocation6], 1
    %1169 = vsyncpa [#allocation4], 1

</llo_original>
